<compile_context>
chip_gen: v7x
topology: tpu7x:2x2x1
jax: 0.10.0
libtpu: 0.0.40
codegen_flags: <defaults>
</compile_context>

<pallas_src>
import jax
import jax.numpy as jnp
from jax.experimental import pallas as pl
from jax.experimental.pallas import tpu as pltpu

EPS = 1e-5


def conv_decouple(x_nchw, params):
    """x_nchw: (N, Cin, H, W) float32 -> (N, Cp, H, W) float32."""
    N, Cin, H, W = x_nchw.shape
    Cp = params["w1"].shape[1]
    WCin, WCp = W * Cin, W * Cp
    NH = N * H
    inv_n = 1.0 / float(N * H * W)

    # TODO(synk): the lane rotate-and-add BN reduction below assumes W is a
    # power of two; fall back to a 0/1 channel-summing matmul otherwise.
    assert W > 0 and (W & (W - 1)) == 0, "W must be a power of two"

    # ---- repack input: NCHW -> (N*H, W*Cin)  (lane axis = W*Cin) ----
    x2d = jnp.transpose(x_nchw, (0, 2, 3, 1)).reshape(NH, WCin)

    # ---- wrapper-side (plain XLA) lane-packed weight construction ----
    # conv1: block-diagonal weight; conv1 bias dropped (cancelled by BN1).
    w1b = jnp.kron(jnp.eye(W, dtype=jnp.float32), params["w1"])       # (W*Cin, W*Cp)
    # conv2: per-ky block-tridiagonal weights (kx taps + W-edge zero padding
    # folded in), STACKED along K so conv2 is a single K=3*W*Cp matmul.
    w2 = params["w2"]                                                 # (3,3,Cp,Cp) HWIO
    w2cat = jnp.concatenate([
        sum(jnp.kron(jnp.eye(W, k=1 - kx, dtype=jnp.float32), w2[ky, kx])
            for kx in range(3))
        for ky in range(3)], axis=0)                                  # (3*W*Cp, W*Cp)
    # H-edge validity masks for the ky=0 / ky=2 taps (precomputed wrapper-side;
    # replaces the in-kernel iota + integer modulo + selects).
    y = jnp.arange(NH, dtype=jnp.int32) % H
    m_top = (y != 0).astype(jnp.float32).reshape(NH, 1)       # h[y-1] valid
    m_bot = (y != H - 1).astype(jnp.float32).reshape(NH, 1)   # h[y+1] valid
    # BN affine params tiled to the packed lane layout (lane = x*Cp + c).
    tile = lambda v: jnp.tile(v.reshape(1, Cp), (1, W))
    g1t, be1t = tile(params["g1"]), tile(params["be1"])
    g2t, be2t = tile(params["g2"]), tile(params["be2"])

    # TODO(synk): bf16 matmul operands (f32 accumulate) are the next MXU
    # throughput lever per the review, but the review also flags them as a
    # tolerance risk at the 2e-3 validation bound (BN's 1/sigma amplifies
    # operand rounding); keep f32 operands until validated on hardware.
    # TODO(synk): beyond toy sizes: (a) exploit the band structure (kx taps as
    # +/-Cp lane rolls) or drop W-lane-packing once Cp >= 128 so packed weights
    # stop scaling as (W*Cp)^2 (v7x 64 MiB VMEM / v5e 16 MiB scoped default;
    # set vmem_limit_bytes explicitly), and (b) tile N*H over a "parallel"
    # grid axis with VMEM partial-sum scratch + a second normalization pass
    # (BN stats are batch-global) so DMA overlaps compute and both v7x
    # TensorCores are used.

    def kernel(x_ref, w1_ref, w2_ref, mtop_ref, mbot_ref,
               g1_ref, be1_ref, g2_ref, be2_ref, o_ref):
        def bn_relu(v, g, be):
            # Training-mode BN fused to one scale/shift; one sweep for sum/sumsq.
            sums = jnp.concatenate(
                [jnp.sum(v, axis=0, keepdims=True),
                 jnp.sum(v * v, axis=0, keepdims=True)], axis=0)      # (2, W*Cp)
            # log2(W) rotate-and-add lane all-reduce over the W lane blocks:
            # each lane x*Cp + c ends up holding the per-channel total.
            step = Cp
            while step < WCp:
                sums = sums + pltpu.roll(sums, shift=step, axis=1)
                step *= 2
            stats = sums * inv_n
            mu = stats[0:1, :]
            var = stats[1:2, :] - mu * mu                             # biased var
            scale = g * jax.lax.rsqrt(var + EPS)
            shift = be - mu * scale
            return jnp.maximum(v * scale + shift, 0.0)

        # conv1 (1x1) + BN1 + ReLU  -- one lane-dense matmul, no bias add.
        h = jnp.dot(x_ref[...], w1_ref[...], preferred_element_type=jnp.float32)
        h = bn_relu(h, g1_ref[...], be1_ref[...])

        # conv2 (3x3, pad=1, no bias): ky taps via non-negative XLU sublane
        # rolls + precomputed H-edge masks; taps concatenated along the
        # 128-aligned lane axis -> ONE K=3*W*Cp MXU matmul.
        down = mtop_ref[...] * pltpu.roll(h, shift=1, axis=0)         # h[y-1]
        up = mbot_ref[...] * pltpu.roll(h, shift=NH - 1, axis=0)      # h[y+1]
        hcat = jnp.concatenate([down, h, up], axis=-1)                # (NH, 3*W*Cp)
        acc = jnp.dot(hcat, w2_ref[...], preferred_element_type=jnp.float32)

        # BN2 + ReLU, lane-dense (N*H, W*Cp) store (unmasked 128-lane stores).
        o_ref[...] = bn_relu(acc, g2_ref[...], be2_ref[...]).astype(o_ref.dtype)

    full = lambda shape: pl.BlockSpec(shape, lambda i: (0,) * len(shape))

    out2d = pl.pallas_call(
        kernel,
        out_shape=jax.ShapeDtypeStruct((NH, WCp), jnp.float32),
        grid=(1,),
        in_specs=[
            full((NH, WCin)),                  # x, lane-packed
            full((WCin, WCp)),                 # conv1 block-diagonal weight
            full((3 * WCp, WCp)),              # conv2 stacked block-banded weight
            full((NH, 1)), full((NH, 1)),      # H-edge masks (ky=0 / ky=2)
            full((1, WCp)), full((1, WCp)),    # bn1 gamma / beta (tiled)
            full((1, WCp)), full((1, WCp)),    # bn2 gamma / beta (tiled)
        ],
        out_specs=full((NH, WCp)),
        compiler_params=pltpu.CompilerParams(
            dimension_semantics=("arbitrary",)),
    )(x2d, w1b, w2cat, m_top, m_bot, g1t, be1t, g2t, be2t)

    return jnp.transpose(out2d.reshape(N, H, W, Cp), (0, 3, 1, 2))


def ref_forward(x_nchw, p):
    """Pure-JAX reference (includes the conv1 bias, which BN1 cancels)."""
    x = jnp.transpose(x_nchw, (0, 2, 3, 1))
    h = jnp.einsum("nhwc,cd->nhwd", x, p["w1"]) + p["b1"][0]
    mu = jnp.mean(h, axis=(0, 1, 2))
    var = jnp.mean((h - mu) ** 2, axis=(0, 1, 2))
    h = (h - mu) / jnp.sqrt(var + EPS) * p["g1"][0] + p["be1"][0]
    h = jnp.maximum(h, 0.0)
    h2 = jax.lax.conv_general_dilated(
        h, p["w2"], (1, 1), "SAME",
        dimension_numbers=("NHWC", "HWIO", "NHWC"))
    mu2 = jnp.mean(h2, axis=(0, 1, 2))
    var2 = jnp.mean((h2 - mu2) ** 2, axis=(0, 1, 2))
    h2 = (h2 - mu2) / jnp.sqrt(var2 + EPS) * p["g2"][0] + p["be2"][0]
    h2 = jnp.maximum(h2, 0.0)
    return jnp.transpose(h2, (0, 3, 1, 2))


def init_params(key, inplanes, planes):
    ks = jax.random.split(key, 6)
    return {
        "w1": 0.2 * jax.random.normal(ks[0], (inplanes, planes), jnp.float32),
        "b1": 0.1 * jax.random.normal(ks[1], (1, planes), jnp.float32),
        "g1": 1.0 + 0.1 * jax.random.normal(ks[2], (1, planes), jnp.float32),
        "be1": 0.1 * jax.random.normal(ks[3], (1, planes), jnp.float32),
        "w2": 0.1 * jax.random.normal(ks[4], (3, 3, planes, planes), jnp.float32),
        "g2": 1.0 + 0.1 * jax.random.normal(ks[5], (1, planes), jnp.float32),
        "be2": jnp.zeros((1, planes), jnp.float32),
    }
    # TODO(synk): BatchNorm running_mean/running_var updates (a training-only
    # side effect that does not affect this forward's output) are not modeled.


if __name__ == "__main__":
    N, Cin, Cp, H, W = 2, 4, 8, 16, 16
    key = jax.random.PRNGKey(0)
    kx, kp = jax.random.split(key)
    x = jax.random.normal(kx, (N, Cin, H, W), jnp.float32)
    params = init_params(kp, Cin, Cp)

    out = jax.block_until_ready(conv_decouple(x, params))
    ref = jax.block_until_ready(ref_forward(x, params))

    assert out.shape == (N, Cp, H, W)
    max_err = float(jnp.max(jnp.abs(out - ref)))
    assert jnp.allclose(out, ref, atol=2e-3, rtol=2e-3), max_err
    print("KERNEL_OK")
</pallas_src>

<mosaic_0001>
module attributes {stable_mosaic.version = 11 : i64} {
  func.func @kernel(%arg0: i32, %arg1: memref<32x64xf32, #tpu.memory_space<vmem>>, %arg2: memref<64x128xf32, #tpu.memory_space<vmem>>, %arg3: memref<384x128xf32, #tpu.memory_space<vmem>>, %arg4: memref<32x1xf32, #tpu.memory_space<vmem>>, %arg5: memref<32x1xf32, #tpu.memory_space<vmem>>, %arg6: memref<1x128xf32, #tpu.memory_space<vmem>>, %arg7: memref<1x128xf32, #tpu.memory_space<vmem>>, %arg8: memref<1x128xf32, #tpu.memory_space<vmem>>, %arg9: memref<1x128xf32, #tpu.memory_space<vmem>>, %arg10: memref<32x128xf32, #tpu.memory_space<vmem>>) attributes {dimension_semantics = [#tpu.dimension_semantics<arbitrary>], iteration_bounds = array<i64: 1>, scalar_prefetch = 0 : i64, scratch_operands = 0 : i64, tpu.core_type = #tpu.core_type<tc>, window_params = [{pipeline_mode = #tpu.pipeline_mode<synchronous>, transform_indices = @transform_0, window_bounds = array<i64: 32, 64>}, {pipeline_mode = #tpu.pipeline_mode<synchronous>, transform_indices = @transform_1, window_bounds = array<i64: 64, 128>}, {pipeline_mode = #tpu.pipeline_mode<synchronous>, transform_indices = @transform_2, window_bounds = array<i64: 384, 128>}, {pipeline_mode = #tpu.pipeline_mode<synchronous>, transform_indices = @transform_3, window_bounds = array<i64: 32, 1>}, {pipeline_mode = #tpu.pipeline_mode<synchronous>, transform_indices = @transform_4, window_bounds = array<i64: 32, 1>}, {pipeline_mode = #tpu.pipeline_mode<synchronous>, transform_indices = @transform_5, window_bounds = array<i64: 1, 128>}, {pipeline_mode = #tpu.pipeline_mode<synchronous>, transform_indices = @transform_6, window_bounds = array<i64: 1, 128>}, {pipeline_mode = #tpu.pipeline_mode<synchronous>, transform_indices = @transform_7, window_bounds = array<i64: 1, 128>}, {pipeline_mode = #tpu.pipeline_mode<synchronous>, transform_indices = @transform_8, window_bounds = array<i64: 1, 128>}, {pipeline_mode = #tpu.pipeline_mode<synchronous>, transform_indices = @transform_9, window_bounds = array<i64: 32, 128>}]} {
    %c0 = arith.constant 0 : index
    %c0_0 = arith.constant 0 : index
    %0 = vector.load %arg1[%c0, %c0_0] : memref<32x64xf32, #tpu.memory_space<vmem>>, vector<32x64xf32>
    %c0_1 = arith.constant 0 : index
    %c0_2 = arith.constant 0 : index
    %1 = vector.load %arg2[%c0_1, %c0_2] : memref<64x128xf32, #tpu.memory_space<vmem>>, vector<64x128xf32>
    %cst = arith.constant dense<0.000000e+00> : vector<32x128xf32>
    %2 = tpu.matmul %0, %1, %cst {dimension_numbers = #tpu.dot_dimension_numbers<[1], [0], [0], [1], [0, 0, 1, 1], [], []>} : vector<32x64xf32>, vector<64x128xf32>, vector<32x128xf32> -> vector<32x128xf32>
    %c0_3 = arith.constant 0 : index
    %c0_4 = arith.constant 0 : index
    %3 = vector.load %arg6[%c0_3, %c0_4] : memref<1x128xf32, #tpu.memory_space<vmem>>, vector<1x128xf32>
    %c0_5 = arith.constant 0 : index
    %c0_6 = arith.constant 0 : index
    %4 = vector.load %arg7[%c0_5, %c0_6] : memref<1x128xf32, #tpu.memory_space<vmem>>, vector<1x128xf32>
    %cst_7 = arith.constant dense<0.000000e+00> : vector<128xf32>
    %5 = vector.multi_reduction <add>, %2, %cst_7 [0] : vector<32x128xf32> to vector<128xf32>
    %6 = vector.shape_cast %5 : vector<128xf32> to vector<1x128xf32>
    %7 = arith.mulf %2, %2 : vector<32x128xf32>
    %cst_8 = arith.constant dense<0.000000e+00> : vector<128xf32>
    %8 = vector.multi_reduction <add>, %7, %cst_8 [0] : vector<32x128xf32> to vector<128xf32>
    %9 = vector.shape_cast %8 : vector<128xf32> to vector<1x128xf32>
    %10 = tpu.concatenate %6, %9 in 0 : vector<1x128xf32>, vector<1x128xf32> -> vector<2x128xf32>
    %c8_i32 = arith.constant 8 : i32
    %11 = tpu.dynamic_rotate %10 by %c8_i32 dim 1 : vector<2x128xf32>, i32 -> vector<2x128xf32>
    %12 = arith.addf %10, %11 : vector<2x128xf32>
    %c16_i32 = arith.constant 16 : i32
    %13 = tpu.dynamic_rotate %12 by %c16_i32 dim 1 : vector<2x128xf32>, i32 -> vector<2x128xf32>
    %14 = arith.addf %12, %13 : vector<2x128xf32>
    %c32_i32 = arith.constant 32 : i32
    %15 = tpu.dynamic_rotate %14 by %c32_i32 dim 1 : vector<2x128xf32>, i32 -> vector<2x128xf32>
    %16 = arith.addf %14, %15 : vector<2x128xf32>
    %c64_i32 = arith.constant 64 : i32
    %17 = tpu.dynamic_rotate %16 by %c64_i32 dim 1 : vector<2x128xf32>, i32 -> vector<2x128xf32>
    %18 = arith.addf %16, %17 : vector<2x128xf32>
    %cst_9 = arith.constant 0.001953125 : f32
    %19 = vector.broadcast %cst_9 : f32 to vector<2x128xf32>
    %20 = arith.mulf %18, %19 : vector<2x128xf32>
    %21 = vector.extract_strided_slice %20 {offsets = [0, 0], sizes = [1, 128], strides = [1, 1]} : vector<2x128xf32> to vector<1x128xf32>
    %22 = vector.extract_strided_slice %20 {offsets = [1, 0], sizes = [1, 128], strides = [1, 1]} : vector<2x128xf32> to vector<1x128xf32>
    %23 = arith.mulf %21, %21 : vector<1x128xf32>
    %24 = arith.subf %22, %23 : vector<1x128xf32>
    %cst_10 = arith.constant 9.99999974E-6 : f32
    %25 = vector.broadcast %cst_10 : f32 to vector<1x128xf32>
    %26 = arith.addf %24, %25 : vector<1x128xf32>
    %27 = math.rsqrt %26 : vector<1x128xf32>
    %28 = arith.mulf %3, %27 : vector<1x128xf32>
    %29 = arith.mulf %21, %28 : vector<1x128xf32>
    %30 = arith.subf %4, %29 : vector<1x128xf32>
    %31 = vector.broadcast %28 : vector<1x128xf32> to vector<32x128xf32>
    %32 = arith.mulf %2, %31 : vector<32x128xf32>
    %33 = vector.broadcast %30 : vector<1x128xf32> to vector<32x128xf32>
    %34 = arith.addf %32, %33 : vector<32x128xf32>
    %cst_11 = arith.constant 0.000000e+00 : f32
    %35 = vector.broadcast %cst_11 : f32 to vector<32x128xf32>
    %36 = arith.maximumf %34, %35 : vector<32x128xf32>
    %c0_12 = arith.constant 0 : index
    %c0_13 = arith.constant 0 : index
    %37 = vector.load %arg4[%c0_12, %c0_13] : memref<32x1xf32, #tpu.memory_space<vmem>>, vector<32x1xf32>
    %c1_i32 = arith.constant 1 : i32
    %38 = tpu.dynamic_rotate %36 by %c1_i32 dim 0 : vector<32x128xf32>, i32 -> vector<32x128xf32>
    %39 = vector.broadcast %37 : vector<32x1xf32> to vector<32x128xf32>
    %40 = arith.mulf %39, %38 : vector<32x128xf32>
    %c0_14 = arith.constant 0 : index
    %c0_15 = arith.constant 0 : index
    %41 = vector.load %arg5[%c0_14, %c0_15] : memref<32x1xf32, #tpu.memory_space<vmem>>, vector<32x1xf32>
    %c31_i32 = arith.constant 31 : i32
    %42 = tpu.dynamic_rotate %36 by %c31_i32 dim 0 : vector<32x128xf32>, i32 -> vector<32x128xf32>
    %43 = vector.broadcast %41 : vector<32x1xf32> to vector<32x128xf32>
    %44 = arith.mulf %43, %42 : vector<32x128xf32>
    %45 = tpu.concatenate %40, %36, %44 in 1 : vector<32x128xf32>, vector<32x128xf32>, vector<32x128xf32> -> vector<32x384xf32>
    %c0_16 = arith.constant 0 : index
    %c0_17 = arith.constant 0 : index
    %46 = vector.load %arg3[%c0_16, %c0_17] : memref<384x128xf32, #tpu.memory_space<vmem>>, vector<384x128xf32>
    %cst_18 = arith.constant dense<0.000000e+00> : vector<32x128xf32>
    %47 = tpu.matmul %45, %46, %cst_18 {dimension_numbers = #tpu.dot_dimension_numbers<[1], [0], [0], [1], [0, 0, 1, 1], [], []>} : vector<32x384xf32>, vector<384x128xf32>, vector<32x128xf32> -> vector<32x128xf32>
    %c0_19 = arith.constant 0 : index
    %c0_20 = arith.constant 0 : index
    %48 = vector.load %arg8[%c0_19, %c0_20] : memref<1x128xf32, #tpu.memory_space<vmem>>, vector<1x128xf32>
    %c0_21 = arith.constant 0 : index
    %c0_22 = arith.constant 0 : index
    %49 = vector.load %arg9[%c0_21, %c0_22] : memref<1x128xf32, #tpu.memory_space<vmem>>, vector<1x128xf32>
    %cst_23 = arith.constant dense<0.000000e+00> : vector<128xf32>
    %50 = vector.multi_reduction <add>, %47, %cst_23 [0] : vector<32x128xf32> to vector<128xf32>
    %51 = vector.shape_cast %50 : vector<128xf32> to vector<1x128xf32>
    %52 = arith.mulf %47, %47 : vector<32x128xf32>
    %cst_24 = arith.constant dense<0.000000e+00> : vector<128xf32>
    %53 = vector.multi_reduction <add>, %52, %cst_24 [0] : vector<32x128xf32> to vector<128xf32>
    %54 = vector.shape_cast %53 : vector<128xf32> to vector<1x128xf32>
    %55 = tpu.concatenate %51, %54 in 0 : vector<1x128xf32>, vector<1x128xf32> -> vector<2x128xf32>
    %c8_i32_25 = arith.constant 8 : i32
    %56 = tpu.dynamic_rotate %55 by %c8_i32_25 dim 1 : vector<2x128xf32>, i32 -> vector<2x128xf32>
    %57 = arith.addf %55, %56 : vector<2x128xf32>
    %c16_i32_26 = arith.constant 16 : i32
    %58 = tpu.dynamic_rotate %57 by %c16_i32_26 dim 1 : vector<2x128xf32>, i32 -> vector<2x128xf32>
    %59 = arith.addf %57, %58 : vector<2x128xf32>
    %c32_i32_27 = arith.constant 32 : i32
    %60 = tpu.dynamic_rotate %59 by %c32_i32_27 dim 1 : vector<2x128xf32>, i32 -> vector<2x128xf32>
    %61 = arith.addf %59, %60 : vector<2x128xf32>
    %c64_i32_28 = arith.constant 64 : i32
    %62 = tpu.dynamic_rotate %61 by %c64_i32_28 dim 1 : vector<2x128xf32>, i32 -> vector<2x128xf32>
    %63 = arith.addf %61, %62 : vector<2x128xf32>
    %cst_29 = arith.constant 0.001953125 : f32
    %64 = vector.broadcast %cst_29 : f32 to vector<2x128xf32>
    %65 = arith.mulf %63, %64 : vector<2x128xf32>
    %66 = vector.extract_strided_slice %65 {offsets = [0, 0], sizes = [1, 128], strides = [1, 1]} : vector<2x128xf32> to vector<1x128xf32>
    %67 = vector.extract_strided_slice %65 {offsets = [1, 0], sizes = [1, 128], strides = [1, 1]} : vector<2x128xf32> to vector<1x128xf32>
    %68 = arith.mulf %66, %66 : vector<1x128xf32>
    %69 = arith.subf %67, %68 : vector<1x128xf32>
    %cst_30 = arith.constant 9.99999974E-6 : f32
    %70 = vector.broadcast %cst_30 : f32 to vector<1x128xf32>
    %71 = arith.addf %69, %70 : vector<1x128xf32>
    %72 = math.rsqrt %71 : vector<1x128xf32>
    %73 = arith.mulf %48, %72 : vector<1x128xf32>
    %74 = arith.mulf %66, %73 : vector<1x128xf32>
    %75 = arith.subf %49, %74 : vector<1x128xf32>
    %76 = vector.broadcast %73 : vector<1x128xf32> to vector<32x128xf32>
    %77 = arith.mulf %47, %76 : vector<32x128xf32>
    %78 = vector.broadcast %75 : vector<1x128xf32> to vector<32x128xf32>
    %79 = arith.addf %77, %78 : vector<32x128xf32>
    %cst_31 = arith.constant 0.000000e+00 : f32
    %80 = vector.broadcast %cst_31 : f32 to vector<32x128xf32>
    %81 = arith.maximumf %79, %80 : vector<32x128xf32>
    %c0_32 = arith.constant 0 : index
    %c0_33 = arith.constant 0 : index
    %82 = vector.load %arg10[%c0_32, %c0_33] : memref<32x128xf32, #tpu.memory_space<vmem>>, vector<32x128xf32>
    tpu.vector_store %arg10[%c0_32, %c0_33], %81 {strides = array<i32>} : memref<32x128xf32, #tpu.memory_space<vmem>>, vector<32x128xf32>,
    return
  }
  func.func @transform_0(%arg0: i32) -> (i32, i32) {
    %c0_i32 = arith.constant 0 : i32
    %c0_i32_0 = arith.constant 0 : i32
    %c0_i32_1 = arith.constant 0 : i32
    return %c0_i32, %c0_i32_0 : i32, i32
  }
  func.func @transform_1(%arg0: i32) -> (i32, i32) {
    %c0_i32 = arith.constant 0 : i32
    %c0_i32_0 = arith.constant 0 : i32
    %c0_i32_1 = arith.constant 0 : i32
    return %c0_i32, %c0_i32_0 : i32, i32
  }
  func.func @transform_2(%arg0: i32) -> (i32, i32) {
    %c0_i32 = arith.constant 0 : i32
    %c0_i32_0 = arith.constant 0 : i32
    %c0_i32_1 = arith.constant 0 : i32
    return %c0_i32, %c0_i32_0 : i32, i32
  }
  func.func @transform_3(%arg0: i32) -> (i32, i32) {
    %c0_i32 = arith.constant 0 : i32
    %c0_i32_0 = arith.constant 0 : i32
    %c0_i32_1 = arith.constant 0 : i32
    return %c0_i32, %c0_i32_0 : i32, i32
  }
  func.func @transform_4(%arg0: i32) -> (i32, i32) {
    %c0_i32 = arith.constant 0 : i32
    %c0_i32_0 = arith.constant 0 : i32
    %c0_i32_1 = arith.constant 0 : i32
    return %c0_i32, %c0_i32_0 : i32, i32
  }
  func.func @transform_5(%arg0: i32) -> (i32, i32) {
    %c0_i32 = arith.constant 0 : i32
    %c0_i32_0 = arith.constant 0 : i32
    %c0_i32_1 = arith.constant 0 : i32
    return %c0_i32, %c0_i32_0 : i32, i32
  }
  func.func @transform_6(%arg0: i32) -> (i32, i32) {
    %c0_i32 = arith.constant 0 : i32
    %c0_i32_0 = arith.constant 0 : i32
    %c0_i32_1 = arith.constant 0 : i32
    return %c0_i32, %c0_i32_0 : i32, i32
  }
  func.func @transform_7(%arg0: i32) -> (i32, i32) {
    %c0_i32 = arith.constant 0 : i32
    %c0_i32_0 = arith.constant 0 : i32
    %c0_i32_1 = arith.constant 0 : i32
    return %c0_i32, %c0_i32_0 : i32, i32
  }
  func.func @transform_8(%arg0: i32) -> (i32, i32) {
    %c0_i32 = arith.constant 0 : i32
    %c0_i32_0 = arith.constant 0 : i32
    %c0_i32_1 = arith.constant 0 : i32
    return %c0_i32, %c0_i32_0 : i32, i32
  }
  func.func @transform_9(%arg0: i32) -> (i32, i32) {
    %c0_i32 = arith.constant 0 : i32
    %c0_i32_0 = arith.constant 0 : i32
    %c0_i32_1 = arith.constant 0 : i32
    return %c0_i32, %c0_i32_0 : i32, i32
  }
}

</mosaic_0001>

<llo_original>
// kernel: tpu_custom_call.1
$region0: #{tpu_custom_call.1}
  #allocation0 [shape = 'u32[]', space=smem, size = 0x4, offset = 0x4, fixed_abs, tag = 'smem constant byte address 0x4 - core index']
  #allocation1 [shape = 'u32[144,128]{1,0:T(1,128)}', space=vmem, size = 0x12000, scoped, tag = 'internal scratch']
  %s0 = inlined_call_operand.hbm [shape: f32[32,64], index: 0, kind: input, shape index: {}]
  %s1 = inlined_call_operand.vmem [shape: f32[64,128], index: 1, kind: input, shape index: {}]
  %s2 = inlined_call_operand.hbm [shape: f32[384,128], index: 2, kind: input, shape index: {}]
  %s3 = inlined_call_operand.vmem [shape: f32[32,1], index: 3, kind: input, shape index: {}]
  %s4 = inlined_call_operand.vmem [shape: f32[32,1], index: 4, kind: input, shape index: {}]
  %s5 = inlined_call_operand.vmem [shape: f32[1,128], index: 5, kind: input, shape index: {}]
  %s6 = inlined_call_operand.vmem [shape: f32[1,128], index: 6, kind: input, shape index: {}]
  %s7 = inlined_call_operand.vmem [shape: f32[1,128], index: 7, kind: input, shape index: {}]
  %s8 = inlined_call_operand.vmem [shape: f32[1,128], index: 8, kind: input, shape index: {}]
  %s9 = inlined_call_operand.hbm [shape: f32[32,128], index: 9, kind: output, shape index: {}]
  %s10 = sld [smem:[#allocation0]]
  $region54: #{tpu_custom_call.1} parent=0
    _
  %s12 = ssub.s32 1, %s10
  %s13 = scalar_select 0, %s12, %s10
  $region1: #{tpu_custom_call.1} parent=0
    #allocation2 [shape = 'u8[16384]{0}', space=vmem, size = 0x4000, scoped, tag = 'input window, operand 0, single buffered']
    #allocation3 [shape = 's32[1]{0}', space=sflag, size = 0x4, scoped, tag = 'scoped memory for tpu_custom_call.1']
    #allocation4 [shape = 's32[1]{0}', space=sflag, size = 0x4, scoped, tag = 'scoped memory for tpu_custom_call.1']
    #allocation5 [shape = 'u8[196608]{0}', space=vmem, size = 0x30000, scoped, tag = 'input window, operand 2, single buffered']
    #allocation6 [shape = 's32[1]{0}', space=sflag, size = 0x4, scoped, tag = 'scoped memory for tpu_custom_call.1']
    #allocation7 [shape = 'u8[16384]{0}', space=vmem, size = 0x4000, scoped, tag = 'output window, operand 0, single buffered']
    %14 = vsyncpa [#allocation3], 0
    %15 = vsyncpa [#allocation6], 0
    %16 = vsyncpa [#allocation4], 0
    // Predicated region
    $region2: #{tpu_custom_call.1} parent=1 // pred_check
      _
    $region3: #{tpu_custom_call.1} parent=1 // pred_check_branch
      %18 = sbr.rel (0) target = $region5
    $region4: #{tpu_custom_call.1} parent=1 // pred_region
      %s20 = ssub.s32 512, 512
      %21 = vsyncadd [#allocation3], %s20
      %s22 = sshll.u32 [#allocation2], 4
      %s23 = int_to_ptr.vmem [resolvable:$true] %s22
      %28 = dma.hbm_to_vmem [thread:$0]  %s0, 512, %s23, [#allocation3], 128, 128, 8
    $region5: #{tpu_custom_call.1} parent=1 // pred_fallthru
      _
    // Predicated region
    $region6: #{tpu_custom_call.1} parent=1 // pred_check
      _
    $region7: #{tpu_custom_call.1} parent=1 // pred_check_branch
      %30 = sbr.rel (0) target = $region9
    $region8: #{tpu_custom_call.1} parent=1 // pred_region
      _
    $region9: #{tpu_custom_call.1} parent=1 // pred_fallthru
      _
    // Predicated region
    $region10: #{tpu_custom_call.1} parent=1 // pred_check
      _
    $region11: #{tpu_custom_call.1} parent=1 // pred_check_branch
      %32 = sbr.rel (0) target = $region13
    $region12: #{tpu_custom_call.1} parent=1 // pred_region
      %s34 = ssub.s32 6144, 6144
      %35 = vsyncadd [#allocation6], %s34
      %s36 = sshll.u32 [#allocation5], 4
      %s37 = int_to_ptr.vmem [resolvable:$true] %s36
      %42 = dma.hbm_to_vmem [thread:$0]  %s2, 6144, %s37, [#allocation6], 128, 128, 8
    $region13: #{tpu_custom_call.1} parent=1 // pred_fallthru
      _
    // Predicated region
    $region14: #{tpu_custom_call.1} parent=1 // pred_check
      _
    $region15: #{tpu_custom_call.1} parent=1 // pred_check_branch
      %44 = sbr.rel (0) target = $region17
    $region16: #{tpu_custom_call.1} parent=1 // pred_region
      _
    $region17: #{tpu_custom_call.1} parent=1 // pred_fallthru
      _
    // Predicated region
    $region18: #{tpu_custom_call.1} parent=1 // pred_check
      _
    $region19: #{tpu_custom_call.1} parent=1 // pred_check_branch
      %46 = sbr.rel (0) target = $region21
    $region20: #{tpu_custom_call.1} parent=1 // pred_region
      _
    $region21: #{tpu_custom_call.1} parent=1 // pred_fallthru
      _
    // Predicated region
    $region22: #{tpu_custom_call.1} parent=1 // pred_check
      _
    $region23: #{tpu_custom_call.1} parent=1 // pred_check_branch
      %48 = sbr.rel (0) target = $region25
    $region24: #{tpu_custom_call.1} parent=1 // pred_region
      _
    $region25: #{tpu_custom_call.1} parent=1 // pred_fallthru
      _
    // Predicated region
    $region26: #{tpu_custom_call.1} parent=1 // pred_check
      _
    $region27: #{tpu_custom_call.1} parent=1 // pred_check_branch
      %50 = sbr.rel (0) target = $region29
    $region28: #{tpu_custom_call.1} parent=1 // pred_region
      _
    $region29: #{tpu_custom_call.1} parent=1 // pred_fallthru
      _
    // Predicated region
    $region30: #{tpu_custom_call.1} parent=1 // pred_check
      _
    $region31: #{tpu_custom_call.1} parent=1 // pred_check_branch
      %52 = sbr.rel (0) target = $region33
    $region32: #{tpu_custom_call.1} parent=1 // pred_region
      _
    $region33: #{tpu_custom_call.1} parent=1 // pred_fallthru
      _
    // Predicated region
    $region34: #{tpu_custom_call.1} parent=1 // pred_check
      _
    $region35: #{tpu_custom_call.1} parent=1 // pred_check_branch
      %54 = sbr.rel (0) target = $region37
    $region36: #{tpu_custom_call.1} parent=1 // pred_region
      _
    $region37: #{tpu_custom_call.1} parent=1 // pred_fallthru
      _
    // Predicated region
    $region38: #{tpu_custom_call.1} parent=1 // pred_check
      _
    $region39: #{tpu_custom_call.1} parent=1 // pred_check_branch
      %56 = sbr.rel (0) target = $region41
    $region40: #{tpu_custom_call.1} parent=1 // pred_region
      %57 = dma.done [#allocation3], 512
    $region41: #{tpu_custom_call.1} parent=1 // pred_fallthru
      _
    // Predicated region
    $region42: #{tpu_custom_call.1} parent=1 // pred_check
      _
    $region43: #{tpu_custom_call.1} parent=1 // pred_check_branch
      %59 = sbr.rel (0) target = $region45
    $region44: #{tpu_custom_call.1} parent=1 // pred_region
      %60 = dma.done [#allocation6], 6144
    $region45: #{tpu_custom_call.1} parent=1 // pred_fallthru
      _
    %v61 = vld [vmem:[#allocation2] sm:$0xff]
    %v62 = vld [vmem:[#allocation2 + $0x8] sm:$0xff]
    %v63 = vld [vmem:[#allocation2 + $0x10] sm:$0xff]
    %v64 = vld [vmem:[#allocation2 + $0x18] sm:$0xff]
    %v65 = vld [vmem:[%s1] sm:$0xff]
    %v66 = vld [vmem:[%s1 + $0x8] sm:$0xff]
    %v67 = vld [vmem:[%s1 + $0x10] sm:$0xff]
    %v68 = vld [vmem:[%s1 + $0x18] sm:$0xff]
    %v69 = vld [vmem:[%s1 + $0x20] sm:$0xff]
    %v70 = vld [vmem:[%s1 + $0x28] sm:$0xff]
    %v71 = vld [vmem:[%s1 + $0x30] sm:$0xff]
    %v72 = vld [vmem:[%s1 + $0x38] sm:$0xff]
    %vm73 = vcmask 523264
    %v75 = vsel %vm73, %v61, 0
    %v78 = vsel %vm73, %v62, 0
    %v81 = vsel %vm73, %v63, 0
    %v84 = vsel %vm73, %v64, 0
    %86 = vmatprep.subr.mxu0 0.0
    %87 = vmatpush1.msra.mxu0 %v65
    %88 = vmatprep.subr.mxu0 0.0
    %89 = vmatpush1.msra.mxu0 %v66
    %90 = vmatprep.subr.mxu0 0.0
    %91 = vmatpush1.msra.mxu0 %v67
    %92 = vmatprep.subr.mxu0 0.0
    %93 = vmatpush1.msra.mxu0 %v68
    %94 = vmatprep.subr.mxu0 0.0
    %95 = vmatpush1.msra.mxu0 %v69
    %96 = vmatprep.subr.mxu0 0.0
    %97 = vmatpush1.msra.mxu0 %v70
    %98 = vmatprep.subr.mxu0 0.0
    %99 = vmatpush1.msra.mxu0 %v71
    %100 = vmatprep.subr.mxu0 0.0
    %101 = vmatpush1.msra.mxu0 %v72
    %102 = vmatprep.subr.mxu0 0.0
    %103 = vmatpush1.msra.mxu0 0.0
    %104 = vmatprep.subr.mxu0 0.0
    %105 = vmatpush1.msra.mxu0 0.0
    %106 = vmatprep.subr.mxu0 0.0
    %107 = vmatpush1.msra.mxu0 0.0
    %108 = vmatprep.subr.mxu0 0.0
    %109 = vmatpush1.msra.mxu0 0.0
    %110 = vmatprep.subr.mxu0 0.0
    %111 = vmatpush1.msra.mxu0 0.0
    %112 = vmatprep.subr.mxu0 0.0
    %113 = vmatpush1.msra.mxu0 0.0
    %114 = vmatprep.subr.mxu0 0.0
    %115 = vmatpush1.msra.mxu0 0.0
    %116 = vmatprep.subr.mxu0 0.0
    %117 = vmatpush1.msra.mxu0 0.0
    %118 = vmatprep.subr.mxu0 0.0
    %119 = vmatpush1.msra.mxu0 0.0
    %120 = vmatprep.subr.mxu0 0.0
    %121 = vmatpush1.msra.mxu0 0.0
    %122 = vmatprep.subr.mxu0 0.0
    %123 = vmatpush1.msra.mxu0 0.0
    %124 = vmatprep.subr.mxu0 0.0
    %125 = vmatpush1.msra.mxu0 0.0
    %126 = vmatprep.subr.mxu0 0.0
    %127 = vmatpush1.msra.mxu0 0.0
    %128 = vmatprep.subr.mxu0 0.0
    %129 = vmatpush1.msra.mxu0 0.0
    %130 = vmatprep.subr.mxu0 0.0
    %131 = vmatpush1.msra.mxu0 0.0
    %132 = vmatprep.subr.mxu0 0.0
    %133 = vmatpush1.msra.mxu0 0.0
    %134 = vmatprep.subr.mxu0 0.0
    %135 = vmatpush1.msra.mxu0 0.0
    %136 = vmatprep.subr.mxu0 0.0
    %137 = vmatpush1.msra.mxu0 0.0
    %138 = vmatprep.subr.mxu0 0.0
    %139 = vmatpush1.msra.mxu0 0.0
    %140 = vmatprep.subr.mxu0 0.0
    %141 = vmatpush1.msra.mxu0 0.0
    %142 = vmatprep.subr.mxu0 0.0
    %143 = vmatpush1.msra.mxu0 0.0
    %144 = vmatprep.subr.mxu0 0.0
    %145 = vmatpush1.msra.mxu0 0.0
    %146 = vmatprep.subr.mxu0 0.0
    %147 = vmatpush1.msra.mxu0 0.0
    %148 = vmatprep.subr.mxu0 0.0
    %149 = vmatpush1.msra.mxu0 0.0
    %150 = vmatprep.mubr.f32.mxu0 0.0
    %151 = vmatmul.mubr.f32.gmra.mrb[0].mxu0 %v75
    %v152 = vpop.f32.mrb[0].mxu0
    %v153 = vadd.f32 0.0, %v152
    %v154 = vpop.f32.mrb[0].mxu0
    %155 = vmatprep.mubr.f32.mxu0 0.0
    %156 = vmatmul.mubr.f32.gmra.mrb[0].mxu0 %v78
    %v157 = vpop.f32.mrb[0].mxu0
    %v158 = vadd.f32 0.0, %v157
    %v159 = vpop.f32.mrb[0].mxu0
    %160 = vmatprep.mubr.f32.mxu0 0.0
    %161 = vmatmul.mubr.f32.gmra.mrb[0].mxu0 %v81
    %v162 = vpop.f32.mrb[0].mxu0
    %v163 = vadd.f32 0.0, %v162
    %v164 = vpop.f32.mrb[0].mxu0
    %165 = vmatprep.mubr.f32.mxu0 0.0
    %166 = vmatmul.mubr.f32.gmra.mrb[0].mxu0 %v84
    %v167 = vpop.f32.mrb[0].mxu0
    %v168 = vadd.f32 0.0, %v167
    %v169 = vpop.f32.mrb[0].mxu0
    %170 = vdwg.mxu0
    %v171 = vld [vmem:[%s5] sm:$0x1]
    %v172 = vld [vmem:[%s6] sm:$0x1]
    %v173 = vadd.f32 %v153, %v158
    %v174 = vadd.f32 %v173, %v163
    %v175 = vadd.f32 %v174, %v168
    %v176 = vrot.slane %v175, 4
    %v177 = vadd.f32 %v175, %v176
    %v178 = vrot.slane %v177, 2
    %v179 = vadd.f32 %v177, %v178
    %v180 = vrot.slane %v179, 1
    %v181 = vadd.f32 %v179, %v180
    %v182 = vmul.f32 %v153, %v153
    %v183 = vmul.f32 %v158, %v158
    %v184 = vmul.f32 %v163, %v163
    %v185 = vmul.f32 %v168, %v168
    %v186 = vadd.f32 %v182, %v183
    %v187 = vadd.f32 %v186, %v184
    %v188 = vadd.f32 %v187, %v185
    %v189 = vrot.slane %v188, 4
    %v190 = vadd.f32 %v188, %v189
    %v191 = vrot.slane %v190, 2
    %v192 = vadd.f32 %v190, %v191
    %v193 = vrot.slane %v192, 1
    %v194 = vadd.f32 %v192, %v193
    %vm195 = vcmask 1040384
    %v196 = vsel %vm195, %v181, %v194
    %197 = vrot.lane.b32.xlu0 %v196, 8
    %v198 = vpop.permute.xlu0 %197
    %v199 = vadd.f32 %v196, %v198
    %200 = vrot.lane.b32.xlu0 %v199, 16
    %v201 = vpop.permute.xlu0 %200
    %v202 = vadd.f32 %v199, %v201
    %203 = vrot.lane.b32.xlu0 %v202, 32
    %v204 = vpop.permute.xlu0 %203
    %v205 = vadd.f32 %v202, %v204
    %206 = vrot.lane.b32.xlu0 %v205, 64
    %v207 = vpop.permute.xlu0 %206
    %v208 = vadd.f32 %v205, %v207
    %v209 = vmul.f32 %v208, 0.001953125
    %v210 = vmul.f32 %v209, %v209
    %v212 = vrot.slane %v210, 7
    %v214 = vsub.f32 %v209, %v212
    %v215 = vadd.f32 %v214, 1e-05
    %v216 = vrsqrt.pop %v215
    %v219 = vunpack.c.l.s4 1966171168
    %v220 = vunpack.c.0.s8 %v219
    %v221 = vlaneseq
    %v222 = vshrl.u32 %v221, 7
    %v223 = vsub.s32 %v220, %v222
    %v224 = vrot.slane %v216, %v223
    %v225 = vcombine.high %v224, %v224
    %v227 = vunpack.c.l.s4 1966171168
    %v228 = vunpack.c.0.s8 %v227
    %v229 = vlaneseq
    %v230 = vshrl.u32 %v229, 7
    %v231 = vsub.s32 %v228, %v230
    %v232 = vrot.slane %v225, %v231
    %v234 = vmul.f32 %v171, %v232
    %v235 = vmul.f32 %v209, %v234
    %v236 = vsub.f32 %v172, %v235
    %v238 = vlaneseq
    %v239 = vshrl.u32 %v238, 7
    %v240 = vsub.s32 0, %v239
    %v241 = vrot.slane %v234, %v240
    %v243 = vmul.f32 %v153, %v241
    %v244 = vmul.f32 %v158, %v241
    %v245 = vmul.f32 %v163, %v241
    %v246 = vmul.f32 %v168, %v241
    %v248 = vlaneseq
    %v249 = vshrl.u32 %v248, 7
    %v250 = vsub.s32 0, %v249
    %v251 = vrot.slane %v236, %v250
    %v253 = vadd.f32 %v243, %v251
    %v254 = vadd.f32 %v244, %v251
    %v255 = vadd.f32 %v245, %v251
    %v256 = vadd.f32 %v246, %v251
    %v257 = vmax.f32 %v253, 0.0
    %v258 = vmax.f32 %v254, 0.0
    %v259 = vmax.f32 %v255, 0.0
    %v260 = vmax.f32 %v256, 0.0
    %v261 = vld [vmem:[%s3] sm:$0xff]
    %v262 = vld [vmem:[%s3 + $0x8] sm:$0xff]
    %v263 = vld [vmem:[%s3 + $0x10] sm:$0xff]
    %v264 = vld [vmem:[%s3 + $0x18] sm:$0xff]
    %v265 = vrot.slane %v257, 7
    %v266 = vrot.slane %v258, 7
    %v267 = vrot.slane %v259, 7
    %v268 = vrot.slane %v260, 7
    %v269 = vlaneseq
    %v270 = vshrl.u32 %v269, 7
    %vm271 = vcmp.lt.s32.totalorder %v270, 1
    %v272 = vsel %vm271, %v267, %v268
    %v273 = vsel %vm271, %v266, %v267
    %v274 = vsel %vm271, %v265, %v266
    %v275 = vsel %vm271, %v268, %v265
    %277 = vset.pattern.permute.xlu0 0
    %278 = vperm.xlu0 %277, %v261
    %v279 = vpop.permute.xlu0 %278
    %282 = vset.pattern.permute.xlu0 0
    %283 = vperm.xlu0 %282, %v262
    %v284 = vpop.permute.xlu0 %283
    %287 = vset.pattern.permute.xlu0 0
    %288 = vperm.xlu0 %287, %v263
    %v289 = vpop.permute.xlu0 %288
    %292 = vset.pattern.permute.xlu0 0
    %293 = vperm.xlu0 %292, %v264
    %v294 = vpop.permute.xlu0 %293
    %v296 = vmul.f32 %v279, %v275
    %v297 = vmul.f32 %v284, %v274
    %v298 = vmul.f32 %v289, %v273
    %v299 = vmul.f32 %v294, %v272
    %v300 = vld [vmem:[%s4] sm:$0xff]
    %v301 = vld [vmem:[%s4 + $0x8] sm:$0xff]
    %v302 = vld [vmem:[%s4 + $0x10] sm:$0xff]
    %v303 = vld [vmem:[%s4 + $0x18] sm:$0xff]
    %v304 = vrot.slane %v257, 1
    %v305 = vrot.slane %v258, 1
    %v306 = vrot.slane %v259, 1
    %v307 = vrot.slane %v260, 1
    %vm308 = vcmp.lt.s32.totalorder %v270, 7
    %v309 = vsel %vm308, %v306, %v307
    %v310 = vsel %vm308, %v305, %v306
    %v311 = vsel %vm308, %v304, %v305
    %v312 = vsel %vm308, %v307, %v304
    %314 = vset.pattern.permute.xlu0 0
    %315 = vperm.xlu0 %314, %v300
    %v316 = vpop.permute.xlu0 %315
    %319 = vset.pattern.permute.xlu0 0
    %320 = vperm.xlu0 %319, %v301
    %v321 = vpop.permute.xlu0 %320
    %324 = vset.pattern.permute.xlu0 0
    %325 = vperm.xlu0 %324, %v302
    %v326 = vpop.permute.xlu0 %325
    %329 = vset.pattern.permute.xlu0 0
    %330 = vperm.xlu0 %329, %v303
    %v331 = vpop.permute.xlu0 %330
    %v333 = vmul.f32 %v316, %v311
    %v334 = vmul.f32 %v321, %v310
    %v335 = vmul.f32 %v326, %v309
    %v336 = vmul.f32 %v331, %v312
    %v337 = vld [vmem:[#allocation5] sm:$0xff]
    %v338 = vld [vmem:[#allocation5 + $0x8] sm:$0xff]
    %v339 = vld [vmem:[#allocation5 + $0x10] sm:$0xff]
    %v340 = vld [vmem:[#allocation5 + $0x18] sm:$0xff]
    %v341 = vld [vmem:[#allocation5 + $0x20] sm:$0xff]
    %v342 = vld [vmem:[#allocation5 + $0x28] sm:$0xff]
    %v343 = vld [vmem:[#allocation5 + $0x30] sm:$0xff]
    %v344 = vld [vmem:[#allocation5 + $0x38] sm:$0xff]
    %v345 = vld [vmem:[#allocation5 + $0x40] sm:$0xff]
    %v346 = vld [vmem:[#allocation5 + $0x48] sm:$0xff]
    %v347 = vld [vmem:[#allocation5 + $0x50] sm:$0xff]
    %v348 = vld [vmem:[#allocation5 + $0x58] sm:$0xff]
    %v349 = vld [vmem:[#allocation5 + $0x60] sm:$0xff]
    %v350 = vld [vmem:[#allocation5 + $0x68] sm:$0xff]
    %v351 = vld [vmem:[#allocation5 + $0x70] sm:$0xff]
    %v352 = vld [vmem:[#allocation5 + $0x78] sm:$0xff]
    %v353 = vld [vmem:[#allocation5 + $0x80] sm:$0xff]
    %v354 = vld [vmem:[#allocation5 + $0x88] sm:$0xff]
    %v355 = vld [vmem:[#allocation5 + $0x90] sm:$0xff]
    %v356 = vld [vmem:[#allocation5 + $0x98] sm:$0xff]
    %v357 = vld [vmem:[#allocation5 + $0xa0] sm:$0xff]
    %v358 = vld [vmem:[#allocation5 + $0xa8] sm:$0xff]
    %v359 = vld [vmem:[#allocation5 + $0xb0] sm:$0xff]
    %v360 = vld [vmem:[#allocation5 + $0xb8] sm:$0xff]
    %v361 = vld [vmem:[#allocation5 + $0xc0] sm:$0xff]
    %v362 = vld [vmem:[#allocation5 + $0xc8] sm:$0xff]
    %v363 = vld [vmem:[#allocation5 + $0xd0] sm:$0xff]
    %v364 = vld [vmem:[#allocation5 + $0xd8] sm:$0xff]
    %v365 = vld [vmem:[#allocation5 + $0xe0] sm:$0xff]
    %v366 = vld [vmem:[#allocation5 + $0xe8] sm:$0xff]
    %v367 = vld [vmem:[#allocation5 + $0xf0] sm:$0xff]
    %v368 = vld [vmem:[#allocation5 + $0xf8] sm:$0xff]
    %v369 = vld [vmem:[#allocation5 + $0x100] sm:$0xff]
    %v370 = vld [vmem:[#allocation5 + $0x108] sm:$0xff]
    %v371 = vld [vmem:[#allocation5 + $0x110] sm:$0xff]
    %v372 = vld [vmem:[#allocation5 + $0x118] sm:$0xff]
    %v373 = vld [vmem:[#allocation5 + $0x120] sm:$0xff]
    %v374 = vld [vmem:[#allocation5 + $0x128] sm:$0xff]
    %v375 = vld [vmem:[#allocation5 + $0x130] sm:$0xff]
    %v376 = vld [vmem:[#allocation5 + $0x138] sm:$0xff]
    %v377 = vld [vmem:[#allocation5 + $0x140] sm:$0xff]
    %v378 = vld [vmem:[#allocation5 + $0x148] sm:$0xff]
    %v379 = vld [vmem:[#allocation5 + $0x150] sm:$0xff]
    %v380 = vld [vmem:[#allocation5 + $0x158] sm:$0xff]
    %v381 = vld [vmem:[#allocation5 + $0x160] sm:$0xff]
    %v382 = vld [vmem:[#allocation5 + $0x168] sm:$0xff]
    %v383 = vld [vmem:[#allocation5 + $0x170] sm:$0xff]
    %v384 = vld [vmem:[#allocation5 + $0x178] sm:$0xff]
    %385 = vmatprep.subr.mxu0 0.0
    %386 = vmatpush1.msra.mxu0 %v337
    %387 = vmatprep.subr.mxu0 0.0
    %388 = vmatpush1.msra.mxu0 %v338
    %389 = vmatprep.subr.mxu0 0.0
    %390 = vmatpush1.msra.mxu0 %v339
    %391 = vmatprep.subr.mxu0 0.0
    %392 = vmatpush1.msra.mxu0 %v340
    %393 = vmatprep.subr.mxu0 0.0
    %394 = vmatpush1.msra.mxu0 %v341
    %395 = vmatprep.subr.mxu0 0.0
    %396 = vmatpush1.msra.mxu0 %v342
    %397 = vmatprep.subr.mxu0 0.0
    %398 = vmatpush1.msra.mxu0 %v343
    %399 = vmatprep.subr.mxu0 0.0
    %400 = vmatpush1.msra.mxu0 %v344
    %401 = vmatprep.subr.mxu0 0.0
    %402 = vmatpush1.msra.mxu0 %v345
    %403 = vmatprep.subr.mxu0 0.0
    %404 = vmatpush1.msra.mxu0 %v346
    %405 = vmatprep.subr.mxu0 0.0
    %406 = vmatpush1.msra.mxu0 %v347
    %407 = vmatprep.subr.mxu0 0.0
    %408 = vmatpush1.msra.mxu0 %v348
    %409 = vmatprep.subr.mxu0 0.0
    %410 = vmatpush1.msra.mxu0 %v349
    %411 = vmatprep.subr.mxu0 0.0
    %412 = vmatpush1.msra.mxu0 %v350
    %413 = vmatprep.subr.mxu0 0.0
    %414 = vmatpush1.msra.mxu0 %v351
    %415 = vmatprep.subr.mxu0 0.0
    %416 = vmatpush1.msra.mxu0 %v352
    %417 = vmatprep.subr.mxu0 0.0
    %418 = vmatpush1.msra.mxu0 %v353
    %419 = vmatprep.subr.mxu0 0.0
    %420 = vmatpush1.msra.mxu0 %v354
    %421 = vmatprep.subr.mxu0 0.0
    %422 = vmatpush1.msra.mxu0 %v355
    %423 = vmatprep.subr.mxu0 0.0
    %424 = vmatpush1.msra.mxu0 %v356
    %425 = vmatprep.subr.mxu0 0.0
    %426 = vmatpush1.msra.mxu0 %v357
    %427 = vmatprep.subr.mxu0 0.0
    %428 = vmatpush1.msra.mxu0 %v358
    %429 = vmatprep.subr.mxu0 0.0
    %430 = vmatpush1.msra.mxu0 %v359
    %431 = vmatprep.subr.mxu0 0.0
    %432 = vmatpush1.msra.mxu0 %v360
    %433 = vmatprep.subr.mxu0 0.0
    %434 = vmatpush1.msra.mxu0 %v361
    %435 = vmatprep.subr.mxu0 0.0
    %436 = vmatpush1.msra.mxu0 %v362
    %437 = vmatprep.subr.mxu0 0.0
    %438 = vmatpush1.msra.mxu0 %v363
    %439 = vmatprep.subr.mxu0 0.0
    %440 = vmatpush1.msra.mxu0 %v364
    %441 = vmatprep.subr.mxu0 0.0
    %442 = vmatpush1.msra.mxu0 %v365
    %443 = vmatprep.subr.mxu0 0.0
    %444 = vmatpush1.msra.mxu0 %v366
    %445 = vmatprep.subr.mxu0 0.0
    %446 = vmatpush1.msra.mxu0 %v367
    %447 = vmatprep.subr.mxu0 0.0
    %448 = vmatpush1.msra.mxu0 %v368
    %449 = vmatprep.mubr.f32.mxu0 %v257
    %450 = vmatmul.mubr.f32.gmra.mrb[0].mxu0 %v296
    %v451 = vpop.f32.mrb[0].mxu0
    %v452 = vadd.f32 0.0, %v451
    %v453 = vpop.f32.mrb[0].mxu0
    %454 = vmatprep.mubr.f32.mxu0 %v258
    %455 = vmatmul.mubr.f32.gmra.mrb[0].mxu0 %v297
    %v456 = vpop.f32.mrb[0].mxu0
    %v457 = vadd.f32 0.0, %v456
    %v458 = vpop.f32.mrb[0].mxu0
    %459 = vmatprep.mubr.f32.mxu0 %v259
    %460 = vmatmul.mubr.f32.gmra.mrb[0].mxu0 %v298
    %v461 = vpop.f32.mrb[0].mxu0
    %v462 = vadd.f32 0.0, %v461
    %v463 = vpop.f32.mrb[0].mxu0
    %464 = vmatprep.mubr.f32.mxu0 %v260
    %465 = vmatmul.mubr.f32.gmra.mrb[0].mxu0 %v299
    %v466 = vpop.f32.mrb[0].mxu0
    %v467 = vadd.f32 0.0, %v466
    %v468 = vpop.f32.mrb[0].mxu0
    %469 = vdwg.mxu0
    %470 = vmatprep.subr.mxu0 0.0
    %471 = vmatpush1.msra.mxu0 %v369
    %472 = vmatprep.subr.mxu0 0.0
    %473 = vmatpush1.msra.mxu0 %v370
    %474 = vmatprep.subr.mxu0 0.0
    %475 = vmatpush1.msra.mxu0 %v371
    %476 = vmatprep.subr.mxu0 0.0
    %477 = vmatpush1.msra.mxu0 %v372
    %478 = vmatprep.subr.mxu0 0.0
    %479 = vmatpush1.msra.mxu0 %v373
    %480 = vmatprep.subr.mxu0 0.0
    %481 = vmatpush1.msra.mxu0 %v374
    %482 = vmatprep.subr.mxu0 0.0
    %483 = vmatpush1.msra.mxu0 %v375
    %484 = vmatprep.subr.mxu0 0.0
    %485 = vmatpush1.msra.mxu0 %v376
    %486 = vmatprep.subr.mxu0 0.0
    %487 = vmatpush1.msra.mxu0 %v377
    %488 = vmatprep.subr.mxu0 0.0
    %489 = vmatpush1.msra.mxu0 %v378
    %490 = vmatprep.subr.mxu0 0.0
    %491 = vmatpush1.msra.mxu0 %v379
    %492 = vmatprep.subr.mxu0 0.0
    %493 = vmatpush1.msra.mxu0 %v380
    %494 = vmatprep.subr.mxu0 0.0
    %495 = vmatpush1.msra.mxu0 %v381
    %496 = vmatprep.subr.mxu0 0.0
    %497 = vmatpush1.msra.mxu0 %v382
    %498 = vmatprep.subr.mxu0 0.0
    %499 = vmatpush1.msra.mxu0 %v383
    %500 = vmatprep.subr.mxu0 0.0
    %501 = vmatpush1.msra.mxu0 %v384
    %502 = vmatprep.subr.mxu0 0.0
    %503 = vmatpush1.msra.mxu0 0.0
    %504 = vmatprep.subr.mxu0 0.0
    %505 = vmatpush1.msra.mxu0 0.0
    %506 = vmatprep.subr.mxu0 0.0
    %507 = vmatpush1.msra.mxu0 0.0
    %508 = vmatprep.subr.mxu0 0.0
    %509 = vmatpush1.msra.mxu0 0.0
    %510 = vmatprep.subr.mxu0 0.0
    %511 = vmatpush1.msra.mxu0 0.0
    %512 = vmatprep.subr.mxu0 0.0
    %513 = vmatpush1.msra.mxu0 0.0
    %514 = vmatprep.subr.mxu0 0.0
    %515 = vmatpush1.msra.mxu0 0.0
    %516 = vmatprep.subr.mxu0 0.0
    %517 = vmatpush1.msra.mxu0 0.0
    %518 = vmatprep.subr.mxu0 0.0
    %519 = vmatpush1.msra.mxu0 0.0
    %520 = vmatprep.subr.mxu0 0.0
    %521 = vmatpush1.msra.mxu0 0.0
    %522 = vmatprep.subr.mxu0 0.0
    %523 = vmatpush1.msra.mxu0 0.0
    %524 = vmatprep.subr.mxu0 0.0
    %525 = vmatpush1.msra.mxu0 0.0
    %526 = vmatprep.subr.mxu0 0.0
    %527 = vmatpush1.msra.mxu0 0.0
    %528 = vmatprep.subr.mxu0 0.0
    %529 = vmatpush1.msra.mxu0 0.0
    %530 = vmatprep.subr.mxu0 0.0
    %531 = vmatpush1.msra.mxu0 0.0
    %532 = vmatprep.subr.mxu0 0.0
    %533 = vmatpush1.msra.mxu0 0.0
    %534 = vmatprep.mubr.f32.mxu0 0.0
    %535 = vmatmul.mubr.f32.gmra.mrb[0].mxu0 %v333
    %v536 = vpop.f32.mrb[0].mxu0
    %v537 = vadd.f32 %v452, %v536
    %v538 = vpop.f32.mrb[0].mxu0
    %539 = vmatprep.mubr.f32.mxu0 0.0
    %540 = vmatmul.mubr.f32.gmra.mrb[0].mxu0 %v334
    %v541 = vpop.f32.mrb[0].mxu0
    %v542 = vadd.f32 %v457, %v541
    %v543 = vpop.f32.mrb[0].mxu0
    %544 = vmatprep.mubr.f32.mxu0 0.0
    %545 = vmatmul.mubr.f32.gmra.mrb[0].mxu0 %v335
    %v546 = vpop.f32.mrb[0].mxu0
    %v547 = vadd.f32 %v462, %v546
    %v548 = vpop.f32.mrb[0].mxu0
    %549 = vmatprep.mubr.f32.mxu0 0.0
    %550 = vmatmul.mubr.f32.gmra.mrb[0].mxu0 %v336
    %v551 = vpop.f32.mrb[0].mxu0
    %v552 = vadd.f32 %v467, %v551
    %v553 = vpop.f32.mrb[0].mxu0
    %554 = vdwg.mxu0
    %v555 = vld [vmem:[%s7] sm:$0x1]
    %v556 = vld [vmem:[%s8] sm:$0x1]
    %v557 = vadd.f32 %v537, %v542
    %v558 = vadd.f32 %v557, %v547
    %v559 = vadd.f32 %v558, %v552
    %v560 = vrot.slane %v559, 4
    %v561 = vadd.f32 %v559, %v560
    %v562 = vrot.slane %v561, 2
    %v563 = vadd.f32 %v561, %v562
    %v564 = vrot.slane %v563, 1
    %v565 = vadd.f32 %v563, %v564
    %v566 = vmul.f32 %v537, %v537
    %v567 = vmul.f32 %v542, %v542
    %v568 = vmul.f32 %v547, %v547
    %v569 = vmul.f32 %v552, %v552
    %v570 = vadd.f32 %v566, %v567
    %v571 = vadd.f32 %v570, %v568
    %v572 = vadd.f32 %v571, %v569
    %v573 = vrot.slane %v572, 4
    %v574 = vadd.f32 %v572, %v573
    %v575 = vrot.slane %v574, 2
    %v576 = vadd.f32 %v574, %v575
    %v577 = vrot.slane %v576, 1
    %v578 = vadd.f32 %v576, %v577
    %v579 = vsel %vm195, %v565, %v578
    %580 = vrot.lane.b32.xlu0 %v579, 8
    %v581 = vpop.permute.xlu0 %580
    %v582 = vadd.f32 %v579, %v581
    %583 = vrot.lane.b32.xlu0 %v582, 16
    %v584 = vpop.permute.xlu0 %583
    %v585 = vadd.f32 %v582, %v584
    %586 = vrot.lane.b32.xlu0 %v585, 32
    %v587 = vpop.permute.xlu0 %586
    %v588 = vadd.f32 %v585, %v587
    %589 = vrot.lane.b32.xlu0 %v588, 64
    %v590 = vpop.permute.xlu0 %589
    %v591 = vadd.f32 %v588, %v590
    %v592 = vmul.f32 %v591, 0.001953125
    %v593 = vmul.f32 %v592, %v592
    %v595 = vrot.slane %v593, 7
    %v597 = vsub.f32 %v592, %v595
    %v598 = vadd.f32 %v597, 1e-05
    %v599 = vrsqrt.pop %v598
    %v602 = vunpack.c.l.s4 1966171168
    %v603 = vunpack.c.0.s8 %v602
    %v604 = vlaneseq
    %v605 = vshrl.u32 %v604, 7
    %v606 = vsub.s32 %v603, %v605
    %v607 = vrot.slane %v599, %v606
    %v608 = vcombine.high %v607, %v607
    %v610 = vunpack.c.l.s4 1966171168
    %v611 = vunpack.c.0.s8 %v610
    %v612 = vlaneseq
    %v613 = vshrl.u32 %v612, 7
    %v614 = vsub.s32 %v611, %v613
    %v615 = vrot.slane %v608, %v614
    %v617 = vmul.f32 %v555, %v615
    %v618 = vmul.f32 %v592, %v617
    %v619 = vsub.f32 %v556, %v618
    %v621 = vlaneseq
    %v622 = vshrl.u32 %v621, 7
    %v623 = vsub.s32 0, %v622
    %v624 = vrot.slane %v617, %v623
    %v626 = vmul.f32 %v537, %v624
    %v627 = vmul.f32 %v542, %v624
    %v628 = vmul.f32 %v547, %v624
    %v629 = vmul.f32 %v552, %v624
    %v631 = vlaneseq
    %v632 = vshrl.u32 %v631, 7
    %v633 = vsub.s32 0, %v632
    %v634 = vrot.slane %v619, %v633
    %v636 = vadd.f32 %v626, %v634
    %v637 = vadd.f32 %v627, %v634
    %v638 = vadd.f32 %v628, %v634
    %v639 = vadd.f32 %v629, %v634
    %v640 = vmax.f32 %v636, 0.0
    %v641 = vmax.f32 %v637, 0.0
    %v642 = vmax.f32 %v638, 0.0
    %v643 = vmax.f32 %v639, 0.0
    %644 = vst [vmem:[#allocation7] sm:$0xff] %v640
    %645 = vst [vmem:[#allocation7 + $0x8] sm:$0xff] %v641
    %646 = vst [vmem:[#allocation7 + $0x10] sm:$0xff] %v642
    %647 = vst [vmem:[#allocation7 + $0x18] sm:$0xff] %v643
    // Predicated region
    $region46: #{tpu_custom_call.1} parent=1 // pred_check
      _
    $region47: #{tpu_custom_call.1} parent=1 // pred_check_branch
      %649 = sbr.rel (0) target = $region49
    $region48: #{tpu_custom_call.1} parent=1 // pred_region
      %s651 = ssub.s32 512, 512
      %652 = vsyncadd [#allocation4], %s651
      %s653 = sshll.u32 [#allocation7], 4
      %s654 = int_to_ptr.vmem [resolvable:$true] %s653
      %659 = dma.vmem_to_hbm [thread:$0]  %s654, 512, %s9, [#allocation4], 128, 128, 8
    $region49: #{tpu_custom_call.1} parent=1 // pred_fallthru
      _
    // Predicated region
    $region50: #{tpu_custom_call.1} parent=1 // pred_check
      _
    $region51: #{tpu_custom_call.1} parent=1 // pred_check_branch
      %661 = sbr.rel (0) target = $region53
    $region52: #{tpu_custom_call.1} parent=1 // pred_region
      %662 = dma.done [#allocation4], 512
    $region53: #{tpu_custom_call.1} parent=1 // pred_fallthru
      _
    %663 = vsyncpa [#allocation3], 1
    %664 = vsyncpa [#allocation6], 1
    %665 = vsyncpa [#allocation4], 1

</llo_original>
